<compile_context>
chip_gen: v6e
topology: v6e:2x2x1
jax: 0.10.0
libtpu: 0.0.40
codegen_flags: <defaults>
</compile_context>

<pallas_src>
import jax
import jax.numpy as jnp
from jax import lax
from jax.experimental import pallas as pl
from jax.experimental.pallas import tpu as pltpu


def _reg_l1_kernel(hit_ref, ind_ref, pred_ref, mask_ref, tgt_ref, out_ref, x_acc):
    b = pl.program_id(0)
    t = pl.program_id(1)
    nt = pl.num_programs(1)

    @pl.when(t == 0)
    def _():
        x_acc[...] = jnp.zeros_like(x_acc)

    # Skip chunks that contain none of the gathered indices (scalar SMEM flag).
    @pl.when(hit_ref[b, t] != 0)
    def _():
        c, tile = pred_ref.shape                     # (C, T)
        k = ind_ref.shape[1]                         # K

        # One-hot gather chunk on the MXU: onehot[i, k] = (i == ind[k] - t*T).
        # The chunk offset is applied to the (1, K) ind row, not the (T, K) iota.
        shifted = ind_ref[...] - t * tile                              # (1, K) int32
        iota = lax.broadcasted_iota(jnp.int32, (tile, k), 0)           # (T, K), step-invariant
        onehot = (iota == shifted).astype(pred_ref.dtype)              # (T, K), 0/1
        # x^T(C, K) += pred(C, T) @ onehot(T, K)  -- exact gather, f32 accumulation.
        x_acc[...] += jnp.dot(pred_ref[...], onehot,
                              preferred_element_type=jnp.float32)      # (C, K)

    @pl.when(t == nt - 1)
    def _():
        m = mask_ref[...]                                      # (1, K)
        diff = jnp.abs(x_acc[...] * m - tgt_ref[...] * m)      # (C, K), exact vs. reference
        sums = jnp.concatenate(
            [jnp.sum(diff).reshape(1, 1), jnp.sum(m).reshape(1, 1)], axis=1)
        out_ref[...] = sums.reshape(1, 1, 2)


def _pick_hw_chunk(hw, k, onehot_itemsize):
    """Largest 128-aligned HW chunk whose (T, lanes(K)) temporaries fit the VMEM budget.

    Returns (T, HW_padded) with HW_padded a multiple of T (>= HW)."""
    k_lanes = max(128, ((k + 127) // 128) * 128)        # lane-padded width of (T, K) temps
    budget = 16 << 20                                    # bytes for iota + compare + onehot
    per_elem = 8 + onehot_itemsize                       # i32 iota + i32 compare + onehot
    max_t = max(128, budget // (per_elem * k_lanes))

    hw_pad = ((hw + 127) // 128) * 128
    t = 128
    for cand in (8192, 4096, 2048, 1024, 512, 256, 128):
        if cand <= max_t:
            t = cand
            break
    if t >= hw_pad:
        return hw_pad, hw_pad                            # single chunk covering all of HW
    hw_pad = ((hw_pad + t - 1) // t) * t
    return t, hw_pad


@jax.jit
def reg_l1_loss(pred, mask, ind, tgt):
    """pred: (B, C, H, W), mask: (B, K, 1), ind: (B, K) int, tgt: (B, K, C)."""
    B, C, H, W = pred.shape
    K = ind.shape[1]
    HW = H * W

    T, HW_pad = _pick_hw_chunk(HW, K, jnp.dtype(pred.dtype).itemsize)
    nT = HW_pad // T

    # Keep pred in its native dtype; reshape is a view (no transpose copy, no upcast).
    pred2 = pred.reshape(B, C, HW)
    if HW_pad != HW:
        pred2 = jnp.pad(pred2, ((0, 0), (0, 0), (0, HW_pad - HW)))

    tgt2 = jnp.transpose(tgt.astype(jnp.float32), (0, 2, 1))    # (B, C, K), tiny
    mask3 = mask.astype(jnp.float32).reshape(B, 1, K)           # (B, 1, K)
    ind3 = ind.astype(jnp.int32).reshape(B, 1, K)               # (B, 1, K)

    # (B, nT) flag table: chunk t of batch b contains at least one gathered index.
    chunk_id = ind.astype(jnp.int32) // T                                       # (B, K)
    hit = jnp.any(chunk_id[:, :, None] ==
                  jnp.arange(nT, dtype=jnp.int32)[None, None, :], axis=1)
    hit = hit.astype(jnp.int32)                                                 # (B, nT)

    partials = pl.pallas_call(
        _reg_l1_kernel,
        out_shape=jax.ShapeDtypeStruct((B, 1, 2), jnp.float32),
        grid_spec=pltpu.PrefetchScalarGridSpec(
            num_scalar_prefetch=1,
            grid=(B, nT),
            in_specs=[
                pl.BlockSpec((None, 1, K), lambda b, t, hit: (b, 0, 0)),   # ind (per-batch)
                pl.BlockSpec((None, C, T), lambda b, t, hit: (b, 0, t)),   # pred HW-chunk
                pl.BlockSpec((None, 1, K), lambda b, t, hit: (b, 0, 0)),   # mask (per-batch)
                pl.BlockSpec((None, C, K), lambda b, t, hit: (b, 0, 0)),   # tgt (per-batch)
            ],
            out_specs=pl.BlockSpec((1, 1, 2), lambda b, t, hit: (b, 0, 0)),
            scratch_shapes=[pltpu.VMEM((C, K), jnp.float32)],              # gathered x accum
        ),
        compiler_params=pltpu.CompilerParams(
            dimension_semantics=("parallel", "arbitrary"),
            vmem_limit_bytes=32 << 20),
    )(hit, ind3, pred2, mask3, tgt2)

    sums = jnp.sum(partials, axis=(0, 1))                       # (sum_abs, sum_mask)
    return sums[0] / (sums[1] + 0.0001)


if __name__ == "__main__":
    B, C, H, W, K = 2, 4, 16, 16, 8
    key = jax.random.PRNGKey(0)
    k1, k2, k3, k4 = jax.random.split(key, 4)

    pred = jax.random.normal(k1, (B, C, H, W), dtype=jnp.float32)
    tgt = jax.random.normal(k2, (B, K, C), dtype=jnp.float32)
    ind = jax.random.randint(k3, (B, K), 0, H * W, dtype=jnp.int32)
    mask = (jax.random.uniform(k4, (B, K, 1)) > 0.3).astype(jnp.float32)

    loss = reg_l1_loss(pred, mask, ind, tgt)
    jax.block_until_ready(loss)

    # pure-JAX reference check
    pred_flat = jnp.transpose(pred, (0, 2, 3, 1)).reshape(B, H * W, C)
    idx = jnp.broadcast_to(ind[:, :, None], (B, K, C))
    x_ref = jnp.take_along_axis(pred_flat, idx, axis=1)
    ref = jnp.sum(jnp.abs(x_ref * mask - tgt * mask)) / (jnp.sum(mask) + 0.0001)
    assert jnp.allclose(loss, ref, atol=1e-5, rtol=1e-5), (loss, ref)

    print("KERNEL_OK")
</pallas_src>

<mosaic_0001>
module attributes {stable_mosaic.version = 11 : i64} {
  func.func @_reg_l1_kernel(%arg0: i32, %arg1: i32, %arg2: memref<2x1xi32, #tpu.memory_space<smem>>, %arg3: memref<1x1x8xi32, #tpu.memory_space<vmem>>, %arg4: memref<1x4x256xf32, #tpu.memory_space<vmem>>, %arg5: memref<1x1x8xf32, #tpu.memory_space<vmem>>, %arg6: memref<1x4x8xf32, #tpu.memory_space<vmem>>, %arg7: memref<1x1x2xf32, #tpu.memory_space<vmem>>, %arg8: memref<4x8xf32, #tpu.memory_space<vmem>>) attributes {dimension_semantics = [#tpu.dimension_semantics<parallel>, #tpu.dimension_semantics<arbitrary>], iteration_bounds = array<i64: 2, 1>, scalar_prefetch = 1 : i64, scratch_operands = 1 : i64, tpu.core_type = #tpu.core_type<tc>, window_params = [{transform_indices = @transform_0, window_bounds = array<i64: 1, 1, 8>}, {transform_indices = @transform_1, window_bounds = array<i64: 1, 4, 256>}, {transform_indices = @transform_2, window_bounds = array<i64: 1, 1, 8>}, {transform_indices = @transform_3, window_bounds = array<i64: 1, 4, 8>}, {transform_indices = @transform_4, window_bounds = array<i64: 1, 1, 2>}]} {
    %c0_i32 = arith.constant 0 : i32
    %0 = arith.cmpi eq, %arg1, %c0_i32 : i32
    %1 = arith.extui %0 : i1 to i32
    %c0_i32_0 = arith.constant 0 : i32
    %2 = arith.cmpi ne, %1, %c0_i32_0 : i32
    scf.if %2 {
      %cst = arith.constant 0.000000e+00 : f32
      %12 = vector.broadcast %cst : f32 to vector<4x8xf32>
      %c0 = arith.constant 0 : index
      %c0_5 = arith.constant 0 : index
      %13 = vector.load %arg8[%c0, %c0_5] : memref<4x8xf32, #tpu.memory_space<vmem>>, vector<4x8xf32>
      tpu.vector_store %arg8[%c0, %c0_5], %12 {strides = array<i32>} : memref<4x8xf32, #tpu.memory_space<vmem>>, vector<4x8xf32>,
    } else {
    }
    %3 = arith.index_cast %arg0 : i32 to index
    %4 = arith.index_cast %arg1 : i32 to index
    %5 = memref.load %arg2[%3, %4] : memref<2x1xi32, #tpu.memory_space<smem>>
    %c0_i32_1 = arith.constant 0 : i32
    %6 = arith.cmpi ne, %5, %c0_i32_1 : i32
    %7 = arith.extui %6 : i1 to i32
    %c0_i32_2 = arith.constant 0 : i32
    %8 = arith.cmpi ne, %7, %c0_i32_2 : i32
    scf.if %8 {
      %c0 = arith.constant 0 : index
      %c0_5 = arith.constant 0 : index
      %c0_6 = arith.constant 0 : index
      %12 = vector.load %arg3[%c0, %c0_5, %c0_6] : memref<1x1x8xi32, #tpu.memory_space<vmem>>, vector<1x1x8xi32>
      %13 = vector.shape_cast %12 : vector<1x1x8xi32> to vector<1x8xi32>
      %c256_i32 = arith.constant 256 : i32
      %14 = arith.muli %arg1, %c256_i32 : i32
      %15 = vector.broadcast %14 : i32 to vector<1x8xi32>
      %16 = arith.subi %13, %15 : vector<1x8xi32>
      %17 = tpu.iota {dimensions = array<i32: 0>} : vector<256x8xi32>
      %18 = vector.broadcast %16 : vector<1x8xi32> to vector<256x8xi32>
      %19 = arith.cmpi eq, %17, %18 : vector<256x8xi32>
      %20 = arith.extui %19 : vector<256x8xi1> to vector<256x8xi32>
      %21 = arith.sitofp %20 : vector<256x8xi32> to vector<256x8xf32>
      %c0_7 = arith.constant 0 : index
      %c0_8 = arith.constant 0 : index
      %22 = vector.load %arg8[%c0_7, %c0_8] : memref<4x8xf32, #tpu.memory_space<vmem>>, vector<4x8xf32>
      %c0_9 = arith.constant 0 : index
      %c0_10 = arith.constant 0 : index
      %c0_11 = arith.constant 0 : index
      %23 = vector.load %arg4[%c0_9, %c0_10, %c0_11] : memref<1x4x256xf32, #tpu.memory_space<vmem>>, vector<1x4x256xf32>
      %24 = vector.shape_cast %23 : vector<1x4x256xf32> to vector<4x256xf32>
      %cst = arith.constant dense<0.000000e+00> : vector<4x8xf32>
      %25 = tpu.matmul %24, %21, %cst {dimension_numbers = #tpu.dot_dimension_numbers<[1], [0], [0], [1], [0, 0, 1, 1], [], []>} : vector<4x256xf32>, vector<256x8xf32>, vector<4x8xf32> -> vector<4x8xf32>
      %26 = arith.addf %22, %25 : vector<4x8xf32>
      %c0_12 = arith.constant 0 : index
      %c0_13 = arith.constant 0 : index
      %27 = vector.load %arg8[%c0_12, %c0_13] : memref<4x8xf32, #tpu.memory_space<vmem>>, vector<4x8xf32>
      tpu.vector_store %arg8[%c0_12, %c0_13], %26 {strides = array<i32>} : memref<4x8xf32, #tpu.memory_space<vmem>>, vector<4x8xf32>,
    } else {
    }
    %c0_i32_3 = arith.constant 0 : i32
    %9 = arith.cmpi eq, %arg1, %c0_i32_3 : i32
    %10 = arith.extui %9 : i1 to i32
    %c0_i32_4 = arith.constant 0 : i32
    %11 = arith.cmpi ne, %10, %c0_i32_4 : i32
    scf.if %11 {
      %c0 = arith.constant 0 : index
      %c0_5 = arith.constant 0 : index
      %c0_6 = arith.constant 0 : index
      %12 = vector.load %arg5[%c0, %c0_5, %c0_6] : memref<1x1x8xf32, #tpu.memory_space<vmem>>, vector<1x1x8xf32>
      %13 = vector.shape_cast %12 : vector<1x1x8xf32> to vector<1x8xf32>
      %c0_7 = arith.constant 0 : index
      %c0_8 = arith.constant 0 : index
      %14 = vector.load %arg8[%c0_7, %c0_8] : memref<4x8xf32, #tpu.memory_space<vmem>>, vector<4x8xf32>
      %15 = vector.broadcast %13 : vector<1x8xf32> to vector<4x8xf32>
      %16 = arith.mulf %14, %15 : vector<4x8xf32>
      %c0_9 = arith.constant 0 : index
      %c0_10 = arith.constant 0 : index
      %c0_11 = arith.constant 0 : index
      %17 = vector.load %arg6[%c0_9, %c0_10, %c0_11] : memref<1x4x8xf32, #tpu.memory_space<vmem>>, vector<1x4x8xf32>
      %18 = vector.shape_cast %17 : vector<1x4x8xf32> to vector<4x8xf32>
      %19 = vector.broadcast %13 : vector<1x8xf32> to vector<4x8xf32>
      %20 = arith.mulf %18, %19 : vector<4x8xf32>
      %21 = arith.subf %16, %20 : vector<4x8xf32>
      %22 = math.absf %21 : vector<4x8xf32>
      %23 = vector.shape_cast %22 : vector<4x8xf32> to vector<1x4x8xf32>
      %cst = arith.constant dense<0.000000e+00> : vector<1xf32>
      %24 = vector.multi_reduction <add>, %23, %cst [1, 2] : vector<1x4x8xf32> to vector<1xf32>
      %25 = vector.shape_cast %24 : vector<1xf32> to vector<1x1x1xf32>
      %26 = vector.extract %25[0, 0, 0] : f32 from vector<1x1x1xf32>
      %27 = vector.broadcast %26 : f32 to vector<1x1xf32>
      %28 = vector.shape_cast %13 : vector<1x8xf32> to vector<1x1x8xf32>
      %cst_12 = arith.constant dense<0.000000e+00> : vector<1xf32>
      %29 = vector.multi_reduction <add>, %28, %cst_12 [1, 2] : vector<1x1x8xf32> to vector<1xf32>
      %30 = vector.shape_cast %29 : vector<1xf32> to vector<1x1x1xf32>
      %31 = vector.extract %30[0, 0, 0] : f32 from vector<1x1x1xf32>
      %32 = vector.broadcast %31 : f32 to vector<1x1xf32>
      %33 = tpu.concatenate %27, %32 in 1 : vector<1x1xf32>, vector<1x1xf32> -> vector<1x2xf32>
      %34 = vector.shape_cast %33 : vector<1x2xf32> to vector<1x1x2xf32>
      %c0_13 = arith.constant 0 : index
      %c0_14 = arith.constant 0 : index
      %c0_15 = arith.constant 0 : index
      %35 = vector.load %arg7[%c0_13, %c0_14, %c0_15] : memref<1x1x2xf32, #tpu.memory_space<vmem>>, vector<1x1x2xf32>
      tpu.vector_store %arg7[%c0_13, %c0_14, %c0_15], %34 {strides = array<i32>} : memref<1x1x2xf32, #tpu.memory_space<vmem>>, vector<1x1x2xf32>,
    } else {
    }
    return
  }
  func.func @transform_0(%arg0: i32, %arg1: i32, %arg2: memref<2x1xi32, #tpu.memory_space<smem>>) -> (i32, i32, i32) {
    %c0_i32 = arith.constant 0 : i32
    %c0_i32_0 = arith.constant 0 : i32
    %c0_i32_1 = arith.constant 0 : i32
    return %arg0, %c0_i32, %c0_i32_0 : i32, i32, i32
  }
  func.func @transform_1(%arg0: i32, %arg1: i32, %arg2: memref<2x1xi32, #tpu.memory_space<smem>>) -> (i32, i32, i32) {
    %c0_i32 = arith.constant 0 : i32
    %c0_i32_0 = arith.constant 0 : i32
    return %arg0, %c0_i32, %arg1 : i32, i32, i32
  }
  func.func @transform_2(%arg0: i32, %arg1: i32, %arg2: memref<2x1xi32, #tpu.memory_space<smem>>) -> (i32, i32, i32) {
    %c0_i32 = arith.constant 0 : i32
    %c0_i32_0 = arith.constant 0 : i32
    %c0_i32_1 = arith.constant 0 : i32
    return %arg0, %c0_i32, %c0_i32_0 : i32, i32, i32
  }
  func.func @transform_3(%arg0: i32, %arg1: i32, %arg2: memref<2x1xi32, #tpu.memory_space<smem>>) -> (i32, i32, i32) {
    %c0_i32 = arith.constant 0 : i32
    %c0_i32_0 = arith.constant 0 : i32
    %c0_i32_1 = arith.constant 0 : i32
    return %arg0, %c0_i32, %c0_i32_0 : i32, i32, i32
  }
  func.func @transform_4(%arg0: i32, %arg1: i32, %arg2: memref<2x1xi32, #tpu.memory_space<smem>>) -> (i32, i32, i32) {
    %c0_i32 = arith.constant 0 : i32
    %c0_i32_0 = arith.constant 0 : i32
    %c0_i32_1 = arith.constant 0 : i32
    return %arg0, %c0_i32, %c0_i32_0 : i32, i32, i32
  }
}

</mosaic_0001>

<llo_original>
// kernel: reg_l1_loss.1
$region0: #{reg_l1_loss.1}
  #allocation0 [shape = 'u32[]', space=smem, size = 0x4, offset = 0x4, fixed_abs, tag = 'smem constant byte address 0x4 - core index']
  #allocation1 [shape = 'u32[144,128]{1,0:T(1,128)}', space=vmem, size = 0x12000, scoped, tag = 'internal scratch']
  #allocation2 [shape = 'f32[4,8]{1,0:T(4,128)}', space=vmem, size = 0x800, scoped, tag = 'scratch operand']
  #allocation3 [shape = 's32[1]{0}', space=sflag, size = 0x4, scoped, tag = 'scoped memory for reg_l1_loss.1']
  #allocation4 [shape = 'u8[1024]{0}', space=smem, size = 0x400, scoped, tag = 'prefetched SMEM operand 0']
  %s0 = inlined_call_operand.vmem [shape: s32[2,1], index: 0, kind: input, shape index: {}]
  %s1 = inlined_call_operand.vmem [shape: s32[2,1,8], index: 1, kind: input, shape index: {}]
  %s2 = inlined_call_operand.vmem [shape: f32[2,4,256], index: 2, kind: input, shape index: {}]
  %s3 = inlined_call_operand.vmem [shape: f32[2,1,8], index: 3, kind: input, shape index: {}]
  %s4 = inlined_call_operand.vmem [shape: f32[2,4,8], index: 4, kind: input, shape index: {}]
  %s5 = inlined_call_operand.vmem [shape: f32[2,1,2], index: 5, kind: output, shape index: {}]
  %s6 = sld [smem:[#allocation0]]
  $region61: #{reg_l1_loss.1} parent=0
    _
  %s8 = ssub.s32 1, %s6
  %s9 = scalar_select 0, %s8, %s6
  %s10 = sshll.u32 %s0, 4
  %s11 = int_to_ptr.vmem [resolvable:$true] %s10
  %13 = dma.vmem_to_smem %s11, 32, [#allocation4], [#allocation3]
  %14 = dma.done [#allocation3], 32
  %15 = sfence
  loop: start=0, step=1, limit=4
  $region2: #{reg_l1_loss.1} parent=0 // loop_pre_header
    _
  $region3: #{reg_l1_loss.1} parent=0 // loop_header
    %s17 = sphi 0, %s21
    %p18 = scmp.ge.s32.totalorder %s17, 4
    %s24 = sphi 0, %s36
    %s25 = sphi 0, %s32
    %s26 = sphi 0, %s24
    %s27 = sphi 0, %s25
    %s28 = sphi 0, %s26
    %s29 = sphi 0, %s27
    %s39 = sphi 0, %s41
    %s42 = sphi 0, %s39
    %s43 = sphi 0, %s42
    %s59 = sphi 0, %s43
    %s67 = sphi 0, %s69
    %s70 = sphi 0, %s67
    %s71 = sphi 0, %s70
    %s87 = sphi 0, %s71
    %s93 = sphi 0, %s95
    %s96 = sphi 0, %s93
    %s97 = sphi 0, %s96
    %s113 = sphi 0, %s97
    %s119 = sphi 0, %s121
    %s122 = sphi 0, %s119
    %s123 = sphi 0, %s122
    %s139 = sphi 0, %s123
    %s145 = sphi 0, %s147
    %s148 = sphi 0, %s145
    %s149 = sphi 0, %s148
    %s165 = sphi 0, %s149
  $region4: #{reg_l1_loss.1} parent=0 // loop_header_branch
    %20 = sbr.rel (%p18) target = $region8
  $region5: #{reg_l1_loss.1} parent=0 // loop_body
    %s22 = ssub.s32 %s17, 1
    %s23 = ssub.s32 %s17, 2
    %s30 = sadd.s32 1, %s25
    %p31 = scmp.ge.s32.totalorder %s30, 1
    %s32 = scalar_select %p31, 0, %s30
    %s33 = sadd.s32 1, %s24
    %s34 = scalar_select %p31, %s33, %s24
    %p35 = scmp.ge.s32.totalorder %s34, 2
    %s36 = scalar_select %p35, 0, %s34
    %s37 = ssub.s32 %s24, %s36
    %p38 = scmp.eq.s32.totalorder %s37, 0
    %s40 = sadd.s32 %s39, 1
    %s41 = scalar_select %p38, %s39, %s40
    %p44 = pneg %p38
    %p45 = scmp.eq.s32.totalorder %s17, 1
    %p46 = por %p44, %p45
    %p47 = scmp.ne.s32.totalorder %s39, %s42
    %p48 = scmp.eq.s32.totalorder %s17, 0
    %p49 = por %p47, %p48
    %p50 = scmp.ne.s32.totalorder %s39, %s42
    %p51 = scmp.eq.s32.totalorder %s22, 1
    %p52 = por %p50, %p51
    %p53 = scmp.ne.s32.totalorder %s42, %s43
    %p54 = scmp.eq.s32.totalorder %s22, 0
    %p55 = por %p53, %p54
    %p56 = scmp.ne.s32.totalorder %s42, %s43
    %p57 = scmp.eq.s32.totalorder %s23, 1
    %p58 = por %p56, %p57
    %p60 = scmp.ne.s32.totalorder %s43, %s59
    %p61 = scmp.eq.s32.totalorder %s23, 0
    %p62 = por %p60, %p61
    %s63 = ssub.s32 %s24, %s36
    %s64 = ssub.s32 %s25, %s32
    %s65 = sor.u32 %s63, %s64
    %p66 = scmp.eq.s32.totalorder %s65, 0
    %s68 = sadd.s32 %s67, 1
    %s69 = scalar_select %p66, %s67, %s68
    %p72 = pneg %p66
    %p73 = scmp.eq.s32.totalorder %s17, 1
    %p74 = por %p72, %p73
    %p75 = scmp.ne.s32.totalorder %s67, %s70
    %p76 = scmp.eq.s32.totalorder %s17, 0
    %p77 = por %p75, %p76
    %p78 = scmp.ne.s32.totalorder %s67, %s70
    %p79 = scmp.eq.s32.totalorder %s22, 1
    %p80 = por %p78, %p79
    %p81 = scmp.ne.s32.totalorder %s70, %s71
    %p82 = scmp.eq.s32.totalorder %s22, 0
    %p83 = por %p81, %p82
    %p84 = scmp.ne.s32.totalorder %s70, %s71
    %p85 = scmp.eq.s32.totalorder %s23, 1
    %p86 = por %p84, %p85
    %p88 = scmp.ne.s32.totalorder %s71, %s87
    %p89 = scmp.eq.s32.totalorder %s23, 0
    %p90 = por %p88, %p89
    %s91 = ssub.s32 %s24, %s36
    %p92 = scmp.eq.s32.totalorder %s91, 0
    %s94 = sadd.s32 %s93, 1
    %s95 = scalar_select %p92, %s93, %s94
    %p98 = pneg %p92
    %p99 = scmp.eq.s32.totalorder %s17, 1
    %p100 = por %p98, %p99
    %p101 = scmp.ne.s32.totalorder %s93, %s96
    %p102 = scmp.eq.s32.totalorder %s17, 0
    %p103 = por %p101, %p102
    %p104 = scmp.ne.s32.totalorder %s93, %s96
    %p105 = scmp.eq.s32.totalorder %s22, 1
    %p106 = por %p104, %p105
    %p107 = scmp.ne.s32.totalorder %s96, %s97
    %p108 = scmp.eq.s32.totalorder %s22, 0
    %p109 = por %p107, %p108
    %p110 = scmp.ne.s32.totalorder %s96, %s97
    %p111 = scmp.eq.s32.totalorder %s23, 1
    %p112 = por %p110, %p111
    %p114 = scmp.ne.s32.totalorder %s97, %s113
    %p115 = scmp.eq.s32.totalorder %s23, 0
    %p116 = por %p114, %p115
    %s117 = ssub.s32 %s24, %s36
    %p118 = scmp.eq.s32.totalorder %s117, 0
    %s120 = sadd.s32 %s119, 1
    %s121 = scalar_select %p118, %s119, %s120
    %p124 = pneg %p118
    %p125 = scmp.eq.s32.totalorder %s17, 1
    %p126 = por %p124, %p125
    %p127 = scmp.ne.s32.totalorder %s119, %s122
    %p128 = scmp.eq.s32.totalorder %s17, 0
    %p129 = por %p127, %p128
    %p130 = scmp.ne.s32.totalorder %s119, %s122
    %p131 = scmp.eq.s32.totalorder %s22, 1
    %p132 = por %p130, %p131
    %p133 = scmp.ne.s32.totalorder %s122, %s123
    %p134 = scmp.eq.s32.totalorder %s22, 0
    %p135 = por %p133, %p134
    %p136 = scmp.ne.s32.totalorder %s122, %s123
    %p137 = scmp.eq.s32.totalorder %s23, 1
    %p138 = por %p136, %p137
    %p140 = scmp.ne.s32.totalorder %s123, %s139
    %p141 = scmp.eq.s32.totalorder %s23, 0
    %p142 = por %p140, %p141
    %s143 = ssub.s32 %s24, %s36
    %p144 = scmp.eq.s32.totalorder %s143, 0
    %s146 = sadd.s32 %s145, 1
    %s147 = scalar_select %p144, %s145, %s146
    %p150 = pneg %p144
    %p151 = scmp.eq.s32.totalorder %s17, 1
    %p152 = por %p150, %p151
    %p153 = scmp.ne.s32.totalorder %s145, %s148
    %p154 = scmp.eq.s32.totalorder %s17, 0
    %p155 = por %p153, %p154
    %p156 = scmp.ne.s32.totalorder %s145, %s148
    %p157 = scmp.eq.s32.totalorder %s22, 1
    %p158 = por %p156, %p157
    %p159 = scmp.ne.s32.totalorder %s148, %s149
    %p160 = scmp.eq.s32.totalorder %s22, 0
    %p161 = por %p159, %p160
    %p162 = scmp.ne.s32.totalorder %s148, %s149
    %p163 = scmp.eq.s32.totalorder %s23, 1
    %p164 = por %p162, %p163
    %p166 = scmp.ne.s32.totalorder %s149, %s165
    %p167 = scmp.eq.s32.totalorder %s23, 0
    %p168 = por %p166, %p167
    %p169 = scmp.le.s32.totalorder 1, %s17
    %p170 = scmp.lt.s32.totalorder %s17, 3
    %p171 = pnand %p169, %p170
    %p172 = pneg %p171
    // Predicated region
    $region9: #{reg_l1_loss.1} parent=5 // pred_check
      _
    $region10: #{reg_l1_loss.1} parent=5 // pred_check_branch
      %174 = sbr.rel (%p171) target = $region12
    $region11: #{reg_l1_loss.1} parent=5 // pred_region
      %s175 = ssub.s32 %s17, 1
    $region12: #{reg_l1_loss.1} parent=5 // pred_fallthru
      _
    %p176 = scmp.lt.s32.totalorder %s17, 2
    // Predicated region
    $region13: #{reg_l1_loss.1} parent=5 // pred_check
      %p177 = pneg %p176
    $region14: #{reg_l1_loss.1} parent=5 // pred_check_branch
      %179 = sbr.rel (%p177) target = $region16
    $region15: #{reg_l1_loss.1} parent=5 // pred_region
      // Predicated region
      $region17: #{reg_l1_loss.1} parent=15 // pred_check
        %p180 = pneg %p49
      $region18: #{reg_l1_loss.1} parent=15 // pred_check_branch
        %182 = sbr.rel (%p180) target = $region20
      $region19: #{reg_l1_loss.1} parent=15 // pred_region
        %p183 = scmp.lt.s32.totalorder %s24, 1
        %s184 = scalar_select %p183, %s24, 1
        %s185 = scalar_lea.vmem %s1, %s184
      $region20: #{reg_l1_loss.1} parent=15 // pred_fallthru
        _
      // Predicated region
      $region21: #{reg_l1_loss.1} parent=15 // pred_check
        %p186 = pneg %p77
      $region22: #{reg_l1_loss.1} parent=15 // pred_check_branch
        %188 = sbr.rel (%p186) target = $region24
      $region23: #{reg_l1_loss.1} parent=15 // pred_region
        %s189 = smul.u32 2, %s25
        %p190 = scmp.lt.s32.totalorder %s24, 1
        %s191 = scalar_select %p190, %s24, 1
        %p192 = scmp.lt.s32.totalorder %s189, 1
        %s193 = scalar_select %p192, %s189, 1
        %s194 = smul.addr %s191, 2
        %s195 = sadd.s32 %s193, %s194
        %s196 = smul.addr %s195, 4
        %s197 = scalar_lea.vmem %s2, %s196
        %s198 = smul.u32 2, %s25
      $region24: #{reg_l1_loss.1} parent=15 // pred_fallthru
        _
      // Predicated region
      $region25: #{reg_l1_loss.1} parent=15 // pred_check
        %p199 = pneg %p103
      $region26: #{reg_l1_loss.1} parent=15 // pred_check_branch
        %201 = sbr.rel (%p199) target = $region28
      $region27: #{reg_l1_loss.1} parent=15 // pred_region
        %p202 = scmp.lt.s32.totalorder %s24, 1
        %s203 = scalar_select %p202, %s24, 1
        %s204 = scalar_lea.vmem %s3, %s203
      $region28: #{reg_l1_loss.1} parent=15 // pred_fallthru
        _
      // Predicated region
      $region29: #{reg_l1_loss.1} parent=15 // pred_check
        %p205 = pneg %p129
      $region30: #{reg_l1_loss.1} parent=15 // pred_check_branch
        %207 = sbr.rel (%p205) target = $region32
      $region31: #{reg_l1_loss.1} parent=15 // pred_region
        %p208 = scmp.lt.s32.totalorder %s24, 1
        %s209 = scalar_select %p208, %s24, 1
        %s210 = smul.addr %s209, 4
        %s211 = scalar_lea.vmem %s4, %s210
      $region32: #{reg_l1_loss.1} parent=15 // pred_fallthru
        _
    $region16: #{reg_l1_loss.1} parent=5 // pred_fallthru
      _
    %p212 = scmp.le.s32.totalorder 1, %s17
    %p213 = scmp.lt.s32.totalorder %s17, 3
    %p214 = pnand %p212, %p213
    %p215 = pneg %p214
    // Predicated region
    $region33: #{reg_l1_loss.1} parent=5 // pred_check
      _
    $region34: #{reg_l1_loss.1} parent=5 // pred_check_branch
      %217 = sbr.rel (%p214) target = $region36
    $region35: #{reg_l1_loss.1} parent=5 // pred_region
      %s218 = ssub.s32 %s17, 1
      %p219 = scmp.lt.s32.totalorder %s26, 1
      %s220 = scalar_select %p219, %s26, 1
      %s221 = scalar_lea.vmem %s1, %s220
      %p222 = pneg %p55
      %p223 = pneg %p52
      %s224 = smul.u32 2, %s27
      %p225 = scmp.lt.s32.totalorder %s26, 1
      %s226 = scalar_select %p225, %s26, 1
      %p227 = scmp.lt.s32.totalorder %s224, 1
      %s228 = scalar_select %p227, %s224, 1
      %s229 = smul.addr %s226, 2
      %s230 = sadd.s32 %s228, %s229
      %s231 = smul.addr %s230, 4
      %s232 = scalar_lea.vmem %s2, %s231
      %p233 = pneg %p83
      %p234 = pneg %p80
      %p235 = scmp.lt.s32.totalorder %s26, 1
      %s236 = scalar_select %p235, %s26, 1
      %s237 = scalar_lea.vmem %s3, %s236
      %p238 = pneg %p109
      %p239 = pneg %p106
      %p240 = scmp.lt.s32.totalorder %s26, 1
      %s241 = scalar_select %p240, %s26, 1
      %s242 = smul.addr %s241, 4
      %s243 = scalar_lea.vmem %s4, %s242
      %p244 = pneg %p135
      %p245 = pneg %p132
      %p246 = pneg %p161
      %p247 = pneg %p158
      %p248 = scmp.lt.s32.totalorder %s26, 1
      %s249 = scalar_select %p248, %s26, 1
      %s250 = scalar_lea.vmem %s5, %s249
      %p251 = scmp.lt.s32.totalorder %s26, 1
      %s252 = scalar_select %p251, %s26, 1
      %s253 = scalar_lea.vmem %s1, %s252
      %s254 = smul.u32 2, %s27
      %p255 = scmp.lt.s32.totalorder %s26, 1
      %s256 = scalar_select %p255, %s26, 1
      %p257 = scmp.lt.s32.totalorder %s254, 1
      %s258 = scalar_select %p257, %s254, 1
      %s259 = smul.addr %s256, 2
      %s260 = sadd.s32 %s258, %s259
      %s261 = smul.addr %s260, 4
      %s262 = scalar_lea.vmem %s2, %s261
      %s263 = smul.u32 2, %s27
      %p264 = scmp.lt.s32.totalorder %s26, 1
      %s265 = scalar_select %p264, %s26, 1
      %s266 = scalar_lea.vmem %s3, %s265
      %p267 = scmp.lt.s32.totalorder %s26, 1
      %s268 = scalar_select %p267, %s26, 1
      %s269 = smul.addr %s268, 4
      %s270 = scalar_lea.vmem %s4, %s269
      %p271 = scmp.lt.s32.totalorder %s26, 1
      %s272 = scalar_select %p271, %s26, 1
      %s273 = scalar_lea.vmem %s5, %s272
      %p274 = scmp.eq.s32.totalorder %s27, 0
      // Predicated region
      $region37: #{reg_l1_loss.1} parent=35 // pred_check
        %p275 = pneg %p274
      $region38: #{reg_l1_loss.1} parent=35 // pred_check_branch
        %277 = sbr.rel (%p275) target = $region40
      $region39: #{reg_l1_loss.1} parent=35 // pred_region
        %vm278 = vcmask 60416
        %279 = vst.msk [vmem:[#allocation2] sm:$0xf] %vm278, 0.0
      $region40: #{reg_l1_loss.1} parent=35 // pred_fallthru
        _
      %s280 = sshra.s32 %s27, 7
      %s281 = sand.u32 %s27, 127
      %s282 = sadd.s32 %s280, %s26
      %s283 = smul.u32 %s282, 128
      %s284 = sshra.s32 %s27, 7
      %s285 = sand.u32 %s27, 127
      %s286 = sadd.s32 %s283, %s285
      %s287 = sld [smem:[#allocation4 + %s286]]
      %p288 = scmp.ne.s32.totalorder %s287, 0
      // Predicated region
      $region41: #{reg_l1_loss.1} parent=35 // pred_check
        %p289 = pneg %p288
      $region42: #{reg_l1_loss.1} parent=35 // pred_check_branch
        %291 = sbr.rel (%p289) target = $region44
      $region43: #{reg_l1_loss.1} parent=35 // pred_region
        %v292 = vld [vmem:[%s253] sm:$0x1]
        %s293 = smul.u32 %s27, 256
        %v294 = vstv %s293
        %v295 = vsub.s32 %v292, %v294
        %v296 = vlaneseq
        %v297 = vshrl.u32 %v296, 7
        %v298 = vadd.s32 %v297, 8
        %v299 = vadd.s32 %v297, 16
        %v300 = vadd.s32 %v297, 24
        %v301 = vadd.s32 %v297, 32
        %v302 = vadd.s32 %v297, 40
        %v303 = vadd.s32 %v297, 48
        %v304 = vadd.s32 %v297, 56
        %v305 = vadd.s32 %v297, 64
        %v306 = vadd.s32 %v297, 72
        %v307 = vadd.s32 %v297, 80
        %v308 = vadd.s32 %v297, 88
        %v309 = vadd.s32 %v297, 96
        %v310 = vadd.s32 %v297, 104
        %v311 = vadd.s32 %v297, 112
        %v312 = vadd.s32 %v297, 120
        %v313 = vadd.s32 %v297, 128
        %v314 = vadd.s32 %v297, 136
        %v315 = vadd.s32 %v297, 144
        %v316 = vadd.s32 %v297, 152
        %v317 = vadd.s32 %v297, 160
        %v318 = vadd.s32 %v297, 168
        %v319 = vadd.s32 %v297, 176
        %v320 = vadd.s32 %v297, 184
        %v321 = vadd.s32 %v297, 192
        %v322 = vadd.s32 %v297, 200
        %v323 = vadd.s32 %v297, 208
        %v324 = vadd.s32 %v297, 216
        %v325 = vadd.s32 %v297, 224
        %v326 = vadd.s32 %v297, 232
        %v327 = vadd.s32 %v297, 240
        %v328 = vadd.s32 %v297, 248
        %v329 = vlaneseq
        %v330 = vshrl.u32 %v329, 7
        %v331 = vsub.s32 0, %v330
        %v332 = vrot.slane %v295, %v331
        %vm333 = vcmp.eq.s32.totalorder %v297, %v332
        %vm334 = vcmp.eq.s32.totalorder %v298, %v332
        %vm335 = vcmp.eq.s32.totalorder %v299, %v332
        %vm336 = vcmp.eq.s32.totalorder %v300, %v332
        %vm337 = vcmp.eq.s32.totalorder %v301, %v332
        %vm338 = vcmp.eq.s32.totalorder %v302, %v332
        %vm339 = vcmp.eq.s32.totalorder %v303, %v332
        %vm340 = vcmp.eq.s32.totalorder %v304, %v332
        %vm341 = vcmp.eq.s32.totalorder %v305, %v332
        %vm342 = vcmp.eq.s32.totalorder %v306, %v332
        %vm343 = vcmp.eq.s32.totalorder %v307, %v332
        %vm344 = vcmp.eq.s32.totalorder %v308, %v332
        %vm345 = vcmp.eq.s32.totalorder %v309, %v332
        %vm346 = vcmp.eq.s32.totalorder %v310, %v332
        %vm347 = vcmp.eq.s32.totalorder %v311, %v332
        %vm348 = vcmp.eq.s32.totalorder %v312, %v332
        %vm349 = vcmp.eq.s32.totalorder %v313, %v332
        %vm350 = vcmp.eq.s32.totalorder %v314, %v332
        %vm351 = vcmp.eq.s32.totalorder %v315, %v332
        %vm352 = vcmp.eq.s32.totalorder %v316, %v332
        %vm353 = vcmp.eq.s32.totalorder %v317, %v332
        %vm354 = vcmp.eq.s32.totalorder %v318, %v332
        %vm355 = vcmp.eq.s32.totalorder %v319, %v332
        %vm356 = vcmp.eq.s32.totalorder %v320, %v332
        %vm357 = vcmp.eq.s32.totalorder %v321, %v332
        %vm358 = vcmp.eq.s32.totalorder %v322, %v332
        %vm359 = vcmp.eq.s32.totalorder %v323, %v332
        %vm360 = vcmp.eq.s32.totalorder %v324, %v332
        %vm361 = vcmp.eq.s32.totalorder %v325, %v332
        %vm362 = vcmp.eq.s32.totalorder %v326, %v332
        %vm363 = vcmp.eq.s32.totalorder %v327, %v332
        %vm364 = vcmp.eq.s32.totalorder %v328, %v332
        %v365 = vsel %vm333, 1, 0
        %v366 = vsel %vm334, 1, 0
        %v367 = vsel %vm335, 1, 0
        %v368 = vsel %vm336, 1, 0
        %v369 = vsel %vm337, 1, 0
        %v370 = vsel %vm338, 1, 0
        %v371 = vsel %vm339, 1, 0
        %v372 = vsel %vm340, 1, 0
        %v373 = vsel %vm341, 1, 0
        %v374 = vsel %vm342, 1, 0
        %v375 = vsel %vm343, 1, 0
        %v376 = vsel %vm344, 1, 0
        %v377 = vsel %vm345, 1, 0
        %v378 = vsel %vm346, 1, 0
        %v379 = vsel %vm347, 1, 0
        %v380 = vsel %vm348, 1, 0
        %v381 = vsel %vm349, 1, 0
        %v382 = vsel %vm350, 1, 0
        %v383 = vsel %vm351, 1, 0
        %v384 = vsel %vm352, 1, 0
        %v385 = vsel %vm353, 1, 0
        %v386 = vsel %vm354, 1, 0
        %v387 = vsel %vm355, 1, 0
        %v388 = vsel %vm356, 1, 0
        %v389 = vsel %vm357, 1, 0
        %v390 = vsel %vm358, 1, 0
        %v391 = vsel %vm359, 1, 0
        %v392 = vsel %vm360, 1, 0
        %v393 = vsel %vm361, 1, 0
        %v394 = vsel %vm362, 1, 0
        %v395 = vsel %vm363, 1, 0
        %v396 = vsel %vm364, 1, 0
        %v397 = vcvt.s32.f32 %v365
        %v398 = vcvt.s32.f32 %v366
        %v399 = vcvt.s32.f32 %v367
        %v400 = vcvt.s32.f32 %v368
        %v401 = vcvt.s32.f32 %v369
        %v402 = vcvt.s32.f32 %v370
        %v403 = vcvt.s32.f32 %v371
        %v404 = vcvt.s32.f32 %v372
        %v405 = vcvt.s32.f32 %v373
        %v406 = vcvt.s32.f32 %v374
        %v407 = vcvt.s32.f32 %v375
        %v408 = vcvt.s32.f32 %v376
        %v409 = vcvt.s32.f32 %v377
        %v410 = vcvt.s32.f32 %v378
        %v411 = vcvt.s32.f32 %v379
        %v412 = vcvt.s32.f32 %v380
        %v413 = vcvt.s32.f32 %v381
        %v414 = vcvt.s32.f32 %v382
        %v415 = vcvt.s32.f32 %v383
        %v416 = vcvt.s32.f32 %v384
        %v417 = vcvt.s32.f32 %v385
        %v418 = vcvt.s32.f32 %v386
        %v419 = vcvt.s32.f32 %v387
        %v420 = vcvt.s32.f32 %v388
        %v421 = vcvt.s32.f32 %v389
        %v422 = vcvt.s32.f32 %v390
        %v423 = vcvt.s32.f32 %v391
        %v424 = vcvt.s32.f32 %v392
        %v425 = vcvt.s32.f32 %v393
        %v426 = vcvt.s32.f32 %v394
        %v427 = vcvt.s32.f32 %v395
        %v428 = vcvt.s32.f32 %v396
        %v429 = vld [vmem:[#allocation2] sm:$0xf]
        %v430 = vld [vmem:[%s262] sm:$0xff]
        %v432 = vcombine.high %v430, %v430
        %434 = vmatprep.subr.mxu0 0.0
        %435 = vmatpush1.msra.mxu0 %v412
        %436 = vmatprep.subr.mxu0 0.0
        %437 = vmatpush1.msra.mxu0 %v411
        %438 = vmatprep.subr.mxu0 0.0
        %439 = vmatpush1.msra.mxu0 %v410
        %440 = vmatprep.subr.mxu0 0.0
        %441 = vmatpush1.msra.mxu0 %v409
        %442 = vmatprep.subr.mxu0 0.0
        %443 = vmatpush1.msra.mxu0 %v408
        %444 = vmatprep.subr.mxu0 0.0
        %445 = vmatpush1.msra.mxu0 %v407
        %446 = vmatprep.subr.mxu0 0.0
        %447 = vmatpush1.msra.mxu0 %v406
        %448 = vmatprep.subr.mxu0 0.0
        %449 = vmatpush1.msra.mxu0 %v405
        %450 = vmatprep.subr.mxu0 0.0
        %451 = vmatpush1.msra.mxu0 %v404
        %452 = vmatprep.subr.mxu0 0.0
        %453 = vmatpush1.msra.mxu0 %v403
        %454 = vmatprep.subr.mxu0 0.0
        %455 = vmatpush1.msra.mxu0 %v402
        %456 = vmatprep.subr.mxu0 0.0
        %457 = vmatpush1.msra.mxu0 %v401
        %458 = vmatprep.subr.mxu0 0.0
        %459 = vmatpush1.msra.mxu0 %v400
        %460 = vmatprep.subr.mxu0 0.0
        %461 = vmatpush1.msra.mxu0 %v399
        %462 = vmatprep.subr.mxu0 0.0
        %463 = vmatpush1.msra.mxu0 %v398
        %464 = vmatprep.subr.mxu0 0.0
        %465 = vmatpush1.msra.mxu0 %v397
        %466 = vmatprep.subr.mxu0 0.0
        %467 = vmatpush2.msra.mxu0 %v428
        %468 = vmatprep.subr.mxu0 0.0
        %469 = vmatpush2.msra.mxu0 %v427
        %470 = vmatprep.subr.mxu0 0.0
        %471 = vmatpush2.msra.mxu0 %v426
        %472 = vmatprep.subr.mxu0 0.0
        %473 = vmatpush2.msra.mxu0 %v425
        %474 = vmatprep.subr.mxu0 0.0
        %475 = vmatpush2.msra.mxu0 %v424
        %476 = vmatprep.subr.mxu0 0.0
        %477 = vmatpush2.msra.mxu0 %v423
        %478 = vmatprep.subr.mxu0 0.0
        %479 = vmatpush2.msra.mxu0 %v422
        %480 = vmatprep.subr.mxu0 0.0
        %481 = vmatpush2.msra.mxu0 %v421
        %482 = vmatprep.subr.mxu0 0.0
        %483 = vmatpush2.msra.mxu0 %v420
        %484 = vmatprep.subr.mxu0 0.0
        %485 = vmatpush2.msra.mxu0 %v419
        %486 = vmatprep.subr.mxu0 0.0
        %487 = vmatpush2.msra.mxu0 %v418
        %488 = vmatprep.subr.mxu0 0.0
        %489 = vmatpush2.msra.mxu0 %v417
        %490 = vmatprep.subr.mxu0 0.0
        %491 = vmatpush2.msra.mxu0 %v416
        %492 = vmatprep.subr.mxu0 0.0
        %493 = vmatpush2.msra.mxu0 %v415
        %494 = vmatprep.subr.mxu0 0.0
        %495 = vmatpush2.msra.mxu0 %v414
        %496 = vmatprep.subr.mxu0 0.0
        %497 = vmatpush2.msra.mxu0 %v413
        %498 = vmatprep.mubr.f32.mxu0 %v432
        %499 = vmatmul.mubr.f32.gmra.mxu0 %v430
        %v500 = vpop.f32.mrf.mxu0
        %v501 = vadd.f32 0.0, %v500
        %v502 = vpop.f32.mrf.mxu0
        %503 = vdwg.mxu0
        %v504 = vadd.f32 %v429, %v501
        %vm505 = vcmask 60416
        %506 = vst.msk [vmem:[#allocation2] sm:$0xf] %vm505, %v504
      $region44: #{reg_l1_loss.1} parent=35 // pred_fallthru
        _
      // Predicated region
      $region45: #{reg_l1_loss.1} parent=35 // pred_check
        %p507 = pneg %p274
      $region46: #{reg_l1_loss.1} parent=35 // pred_check_branch
        %509 = sbr.rel (%p507) target = $region48
      $region47: #{reg_l1_loss.1} parent=35 // pred_region
        %v510 = vld [vmem:[%s266] sm:$0x1]
        %v511 = vld [vmem:[#allocation2] sm:$0xf]
        %v513 = vlaneseq
        %v514 = vshrl.u32 %v513, 7
        %v515 = vsub.s32 0, %v514
        %v516 = vrot.slane %v510, %v515
        %v518 = vmul.f32 %v511, %v516
        %v519 = vld [vmem:[%s270] sm:$0xf]
        %v520 = vmul.f32 %v519, %v516
        %v521 = vsub.f32 %v518, %v520
        %v522 = vand.u32 2147483647, %v521
        %vm523 = vcmask 60416
        %v524 = vsel %vm523, %v522, 0.0
        %525 = vadd.xlane.f32.xlu0 %v524
        %v526 = vpop.xlane.xlu0 %525
        %v527 = vrot.slane %v526, 4
        %v528 = vadd.f32 %v526, %v527
        %v529 = vrot.slane %v528, 2
        %v530 = vadd.f32 %v528, %v529
        %v531 = vrot.slane %v530, 1
        %v532 = vadd.f32 %v530, %v531
        %s533 = vtos %v532
        %v534 = vstv %s533
        %vm535 = vcmask 57344
        %v536 = vsel %vm535, %v510, 0.0
        %537 = vadd.xlane.f32.xlu0 %v536
        %v538 = vpop.xlane.xlu0 %537
        %v539 = vrot.slane %v538, 4
        %v540 = vadd.f32 %v538, %v539
        %v541 = vrot.slane %v540, 2
        %v542 = vadd.f32 %v540, %v541
        %v543 = vrot.slane %v542, 1
        %v544 = vadd.f32 %v542, %v543
        %s545 = vtos %v544
        %v546 = vstv %s545
        %vm547 = vcmask 7168
        %v548 = vsel %vm547, %v534, %v546
        %vm549 = vcmask 8192
        %550 = vst.msk [vmem:[%s273] sm:$0x1] %vm549, %v548
      $region48: #{reg_l1_loss.1} parent=35 // pred_fallthru
        _
      %p551 = scmp.lt.s32.totalorder %s26, 1
      %s552 = scalar_select %p551, %s26, 1
      %s553 = scalar_lea.vmem %s5, %s552
      // Predicated region
      $region49: #{reg_l1_loss.1} parent=35 // pred_check
        %p554 = pneg %p158
      $region50: #{reg_l1_loss.1} parent=35 // pred_check_branch
        %556 = sbr.rel (%p554) target = $region52
      $region51: #{reg_l1_loss.1} parent=35 // pred_region
        _
      $region52: #{reg_l1_loss.1} parent=35 // pred_fallthru
        _
    $region36: #{reg_l1_loss.1} parent=5 // pred_fallthru
      _
    %p557 = scmp.le.s32.totalorder 2, %s17
    // Predicated region
    $region53: #{reg_l1_loss.1} parent=5 // pred_check
      %p558 = pneg %p557
    $region54: #{reg_l1_loss.1} parent=5 // pred_check_branch
      %560 = sbr.rel (%p558) target = $region56
    $region55: #{reg_l1_loss.1} parent=5 // pred_region
      %s561 = ssub.s32 %s17, 2
      // Predicated region
      $region57: #{reg_l1_loss.1} parent=55 // pred_check
        %p562 = pneg %p164
      $region58: #{reg_l1_loss.1} parent=55 // pred_check_branch
        %564 = sbr.rel (%p562) target = $region60
      $region59: #{reg_l1_loss.1} parent=55 // pred_region
        %p565 = scmp.lt.s32.totalorder %s28, 1
        %s566 = scalar_select %p565, %s28, 1
        %s567 = scalar_lea.vmem %s5, %s566
      $region60: #{reg_l1_loss.1} parent=55 // pred_fallthru
        _
    $region56: #{reg_l1_loss.1} parent=5 // pred_fallthru
      _
  $region6: #{reg_l1_loss.1} parent=0 // loop_footer
    %s21 = sadd.s32 1, %s17
  $region7: #{reg_l1_loss.1} parent=0 // loop_footer_branch
    %16 = sbr.rel target = $region3
  $region8: #{reg_l1_loss.1} parent=0 // loop_exit
    _

</llo_original>
